<compile_context>
chip_gen: v7x
topology: tpu7x:2x2x1
jax: 0.10.0
libtpu: 0.0.40
codegen_flags: <defaults>
</compile_context>

<pallas_src>
import functools

import jax
import jax.numpy as jnp
from jax.experimental import pallas as pl
from jax.experimental.pallas import tpu as pltpu

_INV_SQRT2 = 0.7071067811865476      # plain Python float -> folded as a literal
_TANH_GELU_C = 0.7978845608028654    # sqrt(2/pi), for the optional tanh GELU


def _round_up(x, m):
    return ((x + m - 1) // m) * m


def _chip_kind():
    try:
        return jax.devices()[0].device_kind.lower()
    except Exception:
        return ""


def _pick_tile_n(n, target):
    """Lane-dim (N) tile: multiple of 128 <= target, trading pad waste vs AI."""
    target = max(128, (target // 128) * 128)
    best = None  # (cost, tile, padded)
    t = 128
    while t <= target:
        np_ = _round_up(n, t)
        # np_ ~ streamed weight width; 256/t ~ extra x re-streaming penalty.
        cost = np_ * (1.0 + 256.0 / t)
        if (best is None or cost < best[0] - 1e-9
                or (abs(cost - best[0]) < 1e-9 and t > best[1])):
            best = (cost, t, np_)
        t += 128
    return best[1], best[2]


def _pick_tile_k(k, target):
    """Contraction (K) tile: collapse to a single K step when it fits target."""
    k128 = _round_up(k, 128)
    target = max(128, (target // 128) * 128)
    if k128 <= target:
        return k128, k128            # single K grid step, minimal padding
    best = None                      # (tile, padded)
    t = 128
    while t <= target:
        kp = _round_up(k128, t)
        if best is None or kp < best[1] or (kp == best[1] and t > best[0]):
            best = (t, kp)
        t += 128
    return best


def _gelu_quantize(y, use_tanh):
    if use_tanh:
        # tanh-approx GELU routes the transcendental to the EUP (free bundle
        # slot) but may deviate from the exact-erf reference by ~1 LSB.
        g = 0.5 * y * (1.0 + jnp.tanh(_TANH_GELU_C * (y + 0.044715 * y * y * y)))
    else:
        g = 0.5 * y * (1.0 + jax.lax.erf(y * _INV_SQRT2))   # exact (erf) GELU
    return jnp.clip(jnp.round(g), -128.0, 127.0).astype(jnp.int8)


def _matmul_block(x_ref, wt_ref, bf16_mxu):
    if bf16_mxu:
        # v7x: no integer MXU.  bf16 operands are exact for int8 magnitudes and
        # the f32 partial sums are exact integers as long as tk <= 1024
        # (tk*127*127 < 2^24), enforced at construction time.
        w = wt_ref[...]
        if w.dtype != jnp.bfloat16:
            w = w.astype(jnp.bfloat16)
        return jnp.dot(x_ref[...].astype(jnp.bfloat16), w,
                       preferred_element_type=jnp.float32)
    # v5e / v6e: native int8 MXU, int32 accumulation (bit-exact, == cutlass).
    return jnp.dot(x_ref[...], wt_ref[...], preferred_element_type=jnp.int32)


def _kernel_single_k(x_ref, wt_ref, bias_ref, o_ref, *, alpha, bf16_mxu, use_tanh):
    # Whole contraction in one grid step: no accumulator scratch needed.
    acc = _matmul_block(x_ref, wt_ref, bf16_mxu).astype(jnp.float32)
    y = alpha * acc + bias_ref[...]        # bias_ref already holds beta * bias
    o_ref[...] = _gelu_quantize(y, use_tanh)


def _kernel_multi_k(x_ref, wt_ref, bias_ref, o_ref, acc_ref, *, alpha, bf16_mxu,
                    use_tanh):
    k = pl.program_id(2)
    part = _matmul_block(x_ref, wt_ref, bf16_mxu).astype(jnp.int32)

    @pl.when(k == 0)
    def _():
        acc_ref[...] = part                # assign, not zero-fill + add

    @pl.when(k != 0)
    def _():
        acc_ref[...] += part

    @pl.when(k == pl.num_programs(2) - 1)
    def _():
        y = alpha * acc_ref[...].astype(jnp.float32) + bias_ref[...]
        o_ref[...] = _gelu_quantize(y, use_tanh)


class W8A8B8O8LinearGELU:
    """JAX/Pallas port of torch_int W8A8B8O8LinearGELU (inference only).

    One-time work (weight transpose to (K, N), tile padding, beta*bias fold to
    f32, optional bf16 pre-cast on v7x) happens at construction; __call__ only
    reshapes/pads the activation and launches the tiled kernel.
    tm/tn/tk are sweepable upper bounds; actual tiles are shape-aware.
    """

    def __init__(self, weight_i8, bias_i8, alpha, beta, *,
                 tm=512, tn=1024, tk=None, bf16_mxu=None,
                 precast_bf16_weights=False, use_tanh_gelu=False):
        N, K = weight_i8.shape
        self.in_features = K
        self.out_features = N

        kind = _chip_kind()
        self._is_v7 = "v7" in kind
        self._is_v5 = "v5" in kind
        # v7x has no integer MXU -> bf16-operand path there; int8 MXU elsewhere.
        self.bf16_mxu = self._is_v7 if bf16_mxu is None else bf16_mxu
        self.use_tanh_gelu = use_tanh_gelu

        # ---- tile selection ------------------------------------------------
        self.tm_target = max(32, (tm // 32) * 32)
        # K budget for a single grid step (collapses the K axis, drops the
        # accumulator, and avoids re-DMA of x across the N sweep).
        max_single_k = 1024 if self.bf16_mxu else (2048 if self._is_v5 else 4096)
        tk_target = max_single_k if tk is None else tk
        if self.bf16_mxu and tk_target > 1024:
            raise ValueError(
                "bf16-operand (v7x) path requires tk <= 1024 for exact f32 "
                f"partial sums; got tk={tk_target}")
        self.tk, self.Kp = _pick_tile_k(K, tk_target)
        assert (not self.bf16_mxu) or self.tk <= 1024
        self.tn, self.Np = _pick_tile_n(N, tn)

        # ---- one-time weight / bias prep ------------------------------------
        wt = jnp.transpose(weight_i8)                      # (K, N)
        if (self.Kp, self.Np) != (K, N):
            wt = jnp.pad(wt, ((0, self.Kp - K), (0, self.Np - N)))
        if self.bf16_mxu and precast_bf16_weights:
            # Move the per-step int8->bf16 weight cast off the VALU slot.
            # Doubles weight HBM bytes -> only worthwhile at large tiles.
            wt = wt.astype(jnp.bfloat16)
        self.wt = wt                                       # (Kp, Np)

        bias_f32 = jnp.float32(beta) * bias_i8.astype(jnp.float32).reshape(1, N)
        if self.Np != N:
            bias_f32 = jnp.pad(bias_f32, ((0, 0), (0, self.Np - N)))
        self.bias_f32 = bias_f32                           # (1, Np) f32

        # alpha is a static Python float -> baked into the kernel as a literal.
        self.alpha = float(alpha)

    def __call__(self, x_i8):
        x_shape = x_i8.shape
        K = x_shape[-1]
        assert K == self.in_features
        x2d = x_i8.reshape(-1, K)
        M = x2d.shape[0]

        M32 = _round_up(M, 32)
        tm = min(self.tm_target, M32)
        Mp = _round_up(M32, tm)
        if (Mp, self.Kp) != (M, K):
            x2d = jnp.pad(x2d, ((0, Mp - M), (0, self.Kp - K)))  # zero pad: exact

        # Megacore (v7x has 2 TensorCores): keep >= 2 parallel output blocks.
        tn = self.tn
        if (self._is_v7 and (Mp // tm) * (self.Np // tn) < 2
                and tn == self.Np and self.Np % 256 == 0):
            tn = self.Np // 2

        n_k = self.Kp // self.tk
        grid_ij = (Mp // tm, self.Np // tn)

        w_itemsize = 2 if self.wt.dtype == jnp.bfloat16 else 1
        vmem_need = (2 * tm * self.tk                      # x, double-buffered
                     + 2 * self.tk * tn * w_itemsize       # W^T
                     + 2 * tm * tn                         # int8 out
                     + 2 * tn * 4                          # beta*bias
                     + (tm * tn * 4 if n_k > 1 else 0))    # int32 accumulator
        vmem_limit = int(min(48 << 20, max(16 << 20, 2 * vmem_need)))

        if n_k == 1:
            kernel = functools.partial(
                _kernel_single_k, alpha=self.alpha,
                bf16_mxu=self.bf16_mxu, use_tanh=self.use_tanh_gelu)
            grid = grid_ij
            in_specs = [
                pl.BlockSpec((tm, self.Kp), lambda i, j: (i, 0)),      # x
                pl.BlockSpec((self.Kp, tn), lambda i, j: (0, j)),      # W^T
                pl.BlockSpec((1, tn), lambda i, j: (0, j)),            # beta*bias
            ]
            out_specs = pl.BlockSpec((tm, tn), lambda i, j: (i, j))
            scratch_shapes = []
            semantics = ("parallel", "parallel")
        else:
            kernel = functools.partial(
                _kernel_multi_k, alpha=self.alpha,
                bf16_mxu=self.bf16_mxu, use_tanh=self.use_tanh_gelu)
            grid = grid_ij + (n_k,)
            in_specs = [
                pl.BlockSpec((tm, self.tk), lambda i, j, k: (i, k)),   # x
                pl.BlockSpec((self.tk, tn), lambda i, j, k: (k, j)),   # W^T
                pl.BlockSpec((1, tn), lambda i, j, k: (0, j)),         # beta*bias
            ]
            out_specs = pl.BlockSpec((tm, tn), lambda i, j, k: (i, j))
            scratch_shapes = [pltpu.VMEM((tm, tn), jnp.int32)]
            semantics = ("parallel", "parallel", "arbitrary")

        out = pl.pallas_call(
            kernel,
            out_shape=jax.ShapeDtypeStruct((Mp, self.Np), jnp.int8),
            grid=grid,
            in_specs=in_specs,
            out_specs=out_specs,
            scratch_shapes=scratch_shapes,
            compiler_params=pltpu.CompilerParams(
                dimension_semantics=semantics,
                vmem_limit_bytes=vmem_limit,
            ),
        )(x2d, self.wt, self.bias_f32)

        out = out[:M, : self.out_features]
        return out.reshape(*x_shape[:-1], self.out_features)


def _reference(x_i8, weight_i8, bias_i8, alpha, beta):
    # int32 accumulation (matches cutlass), f32 epilogue, exact erf GELU.
    K = x_i8.shape[-1]
    acc = x_i8.astype(jnp.int32).reshape(-1, K) @ weight_i8.astype(jnp.int32).T
    y = (jnp.float32(alpha) * acc.astype(jnp.float32)
         + jnp.float32(beta) * bias_i8.astype(jnp.float32))
    g = 0.5 * y * (1.0 + jax.lax.erf(y * _INV_SQRT2))
    q = jnp.clip(jnp.round(g), -128.0, 127.0).astype(jnp.int8)
    return q.reshape(*x_i8.shape[:-1], weight_i8.shape[0])


if __name__ == "__main__":
    key = jax.random.PRNGKey(0)
    k_x, k_w, k_b = jax.random.split(key, 3)

    batch, seq = 2, 8
    in_features, out_features = 64, 128
    alpha, beta = 0.02, 0.5

    x = jax.random.randint(k_x, (batch, seq, in_features), -127, 127,
                           dtype=jnp.int32).astype(jnp.int8)
    weight = jax.random.randint(k_w, (out_features, in_features), -127, 127,
                                dtype=jnp.int32).astype(jnp.int8)
    bias = jax.random.randint(k_b, (1, out_features), -127, 127,
                              dtype=jnp.int32).astype(jnp.int8)

    mod = W8A8B8O8LinearGELU(weight, bias, alpha, beta)
    y = mod(x)
    y = jax.block_until_ready(y)

    y_ref = _reference(x, weight, bias, alpha, beta)
    assert y.shape == (batch, seq, out_features) and y.dtype == jnp.int8
    # Allow <=1 LSB slack for potential erf-polynomial differences between the
    # Pallas and XLA lowerings; integer matmul/accumulation itself is exact.
    diff = jnp.max(jnp.abs(y.astype(jnp.int32) - y_ref.astype(jnp.int32)))
    assert int(diff) <= 1, f"mismatch vs reference (max |diff| = {int(diff)})"

    print("KERNEL_OK")
</pallas_src>

<mosaic_0001>
module attributes {stable_mosaic.version = 11 : i64} {
  func.func @_kernel_single_k(%arg0: i32, %arg1: i32, %arg2: memref<32x128xi8, #tpu.memory_space<vmem>>, %arg3: memref<128x128xi8, #tpu.memory_space<vmem>>, %arg4: memref<1x128xf32, #tpu.memory_space<vmem>>, %arg5: memref<32x128xi8, #tpu.memory_space<vmem>>) attributes {dimension_semantics = [#tpu.dimension_semantics<parallel>, #tpu.dimension_semantics<parallel>], iteration_bounds = array<i64: 1, 1>, scalar_prefetch = 0 : i64, scratch_operands = 0 : i64, tpu.core_type = #tpu.core_type<tc>, window_params = [{transform_indices = @transform_0, window_bounds = array<i64: 32, 128>}, {transform_indices = @transform_1, window_bounds = array<i64: 128, 128>}, {transform_indices = @transform_2, window_bounds = array<i64: 1, 128>}, {transform_indices = @transform_3, window_bounds = array<i64: 32, 128>}]} {
    %c0 = arith.constant 0 : index
    %c0_0 = arith.constant 0 : index
    %0 = vector.load %arg2[%c0, %c0_0] : memref<32x128xi8, #tpu.memory_space<vmem>>, vector<32x128xi8>
    %c0_1 = arith.constant 0 : index
    %c0_2 = arith.constant 0 : index
    %1 = vector.load %arg3[%c0_1, %c0_2] : memref<128x128xi8, #tpu.memory_space<vmem>>, vector<128x128xi8>
    %cst = arith.constant dense<0> : vector<32x128xi32>
    %2 = tpu.matmul %0, %1, %cst {dimension_numbers = #tpu.dot_dimension_numbers<[1], [0], [0], [1], [0, 0, 1, 1], [], []>} : vector<32x128xi8>, vector<128x128xi8>, vector<32x128xi32> -> vector<32x128xi32>
    %3 = arith.sitofp %2 : vector<32x128xi32> to vector<32x128xf32>
    %cst_3 = arith.constant 2.000000e-02 : f32
    %4 = vector.broadcast %cst_3 : f32 to vector<32x128xf32>
    %5 = arith.mulf %4, %3 : vector<32x128xf32>
    %c0_4 = arith.constant 0 : index
    %c0_5 = arith.constant 0 : index
    %6 = vector.load %arg4[%c0_4, %c0_5] : memref<1x128xf32, #tpu.memory_space<vmem>>, vector<1x128xf32>
    %7 = vector.broadcast %6 : vector<1x128xf32> to vector<32x128xf32>
    %8 = arith.addf %5, %7 : vector<32x128xf32>
    %cst_6 = arith.constant 5.000000e-01 : f32
    %9 = vector.broadcast %cst_6 : f32 to vector<32x128xf32>
    %10 = arith.mulf %9, %8 : vector<32x128xf32>
    %cst_7 = arith.constant 0.707106769 : f32
    %11 = vector.broadcast %cst_7 : f32 to vector<32x128xf32>
    %12 = arith.mulf %8, %11 : vector<32x128xf32>
    %13 = math.erf %12 : vector<32x128xf32>
    %cst_8 = arith.constant 1.000000e+00 : f32
    %14 = vector.broadcast %cst_8 : f32 to vector<32x128xf32>
    %15 = arith.addf %14, %13 : vector<32x128xf32>
    %16 = arith.mulf %10, %15 : vector<32x128xf32>
    %17 = math.roundeven %16 : vector<32x128xf32>
    %cst_9 = arith.constant -1.280000e+02 : f32
    %cst_10 = arith.constant 1.270000e+02 : f32
    %18 = vector.broadcast %cst_9 : f32 to vector<32x128xf32>
    %19 = arith.maximumf %18, %17 : vector<32x128xf32>
    %20 = vector.broadcast %cst_10 : f32 to vector<32x128xf32>
    %21 = arith.minimumf %20, %19 : vector<32x128xf32>
    %22 = arith.fptosi %21 : vector<32x128xf32> to vector<32x128xi8>
    %c0_11 = arith.constant 0 : index
    %c0_12 = arith.constant 0 : index
    %23 = vector.load %arg5[%c0_11, %c0_12] : memref<32x128xi8, #tpu.memory_space<vmem>>, vector<32x128xi8>
    tpu.vector_store %arg5[%c0_11, %c0_12], %22 {strides = array<i32>} : memref<32x128xi8, #tpu.memory_space<vmem>>, vector<32x128xi8>,
    return
  }
  func.func @transform_0(%arg0: i32, %arg1: i32) -> (i32, i32) {
    %c0_i32 = arith.constant 0 : i32
    %c0_i32_0 = arith.constant 0 : i32
    return %arg0, %c0_i32 : i32, i32
  }
  func.func @transform_1(%arg0: i32, %arg1: i32) -> (i32, i32) {
    %c0_i32 = arith.constant 0 : i32
    %c0_i32_0 = arith.constant 0 : i32
    return %c0_i32, %arg1 : i32, i32
  }
  func.func @transform_2(%arg0: i32, %arg1: i32) -> (i32, i32) {
    %c0_i32 = arith.constant 0 : i32
    %c0_i32_0 = arith.constant 0 : i32
    return %c0_i32, %arg1 : i32, i32
  }
  func.func @transform_3(%arg0: i32, %arg1: i32) -> (i32, i32) {
    %c0_i32 = arith.constant 0 : i32
    return %arg0, %arg1 : i32, i32
  }
}

</mosaic_0001>

<llo_original>
// kernel: tpu_custom_call.1
$region0: #{tpu_custom_call.1}
  #allocation0 [shape = 'u32[]', space=smem, size = 0x4, offset = 0x4, fixed_abs, tag = 'smem constant byte address 0x4 - core index']
  #allocation1 [shape = 'u32[144,128]{1,0:T(1,128)}', space=vmem, size = 0x12000, scoped, tag = 'internal scratch']
  %s0 = inlined_call_operand.hbm [shape: s8[32,128], index: 0, kind: input, shape index: {}]
  %s1 = inlined_call_operand.hbm [shape: s8[128,128], index: 1, kind: input, shape index: {}]
  %s2 = inlined_call_operand.vmem [shape: f32[1,128], index: 2, kind: input, shape index: {}]
  %s3 = inlined_call_operand.hbm [shape: s8[32,128], index: 3, kind: output, shape index: {}]
  %s4 = sld [smem:[#allocation0]]
  $region30: #{tpu_custom_call.1} parent=0
    _
  %s6 = ssub.s32 1, %s4
  %s7 = scalar_select 0, %s6, %s4
  $region1: #{tpu_custom_call.1} parent=0
    #allocation2 [shape = 'u8[4096]{0}', space=vmem, size = 0x1000, scoped, tag = 'input window, operand 0, single buffered']
    #allocation3 [shape = 's32[1]{0}', space=sflag, size = 0x4, scoped, tag = 'scoped memory for tpu_custom_call.1']
    #allocation4 [shape = 's32[1]{0}', space=sflag, size = 0x4, scoped, tag = 'scoped memory for tpu_custom_call.1']
    #allocation5 [shape = 'u8[16384]{0}', space=vmem, size = 0x4000, scoped, tag = 'input window, operand 1, single buffered']
    #allocation6 [shape = 's32[1]{0}', space=sflag, size = 0x4, scoped, tag = 'scoped memory for tpu_custom_call.1']
    #allocation7 [shape = 'u8[4096]{0}', space=vmem, size = 0x1000, scoped, tag = 'output window, operand 0, single buffered']
    %8 = vsyncpa [#allocation3], 0
    %9 = vsyncpa [#allocation6], 0
    %10 = vsyncpa [#allocation4], 0
    // Predicated region
    $region2: #{tpu_custom_call.1} parent=1 // pred_check
      _
    $region3: #{tpu_custom_call.1} parent=1 // pred_check_branch
      %12 = sbr.rel (0) target = $region5
    $region4: #{tpu_custom_call.1} parent=1 // pred_region
      %s14 = ssub.s32 128, 128
      %15 = vsyncadd [#allocation3], %s14
      %s17 = sshll.u32 [#allocation2], 4
      %s18 = int_to_ptr.vmem [resolvable:$true] %s17
      %20 = dma.hbm_to_vmem [thread:$0]  %s0, 128, %s18, [#allocation3]
    $region5: #{tpu_custom_call.1} parent=1 // pred_fallthru
      _
    // Predicated region
    $region6: #{tpu_custom_call.1} parent=1 // pred_check
      _
    $region7: #{tpu_custom_call.1} parent=1 // pred_check_branch
      %22 = sbr.rel (0) target = $region9
    $region8: #{tpu_custom_call.1} parent=1 // pred_region
      %s24 = ssub.s32 512, 512
      %25 = vsyncadd [#allocation6], %s24
      %s26 = sshll.u32 [#allocation5], 4
      %s27 = int_to_ptr.vmem [resolvable:$true] %s26
      %32 = dma.hbm_to_vmem [thread:$0]  %s1, 512, %s27, [#allocation6], 128, 128, 8
    $region9: #{tpu_custom_call.1} parent=1 // pred_fallthru
      _
    // Predicated region
    $region10: #{tpu_custom_call.1} parent=1 // pred_check
      _
    $region11: #{tpu_custom_call.1} parent=1 // pred_check_branch
      %34 = sbr.rel (0) target = $region13
    $region12: #{tpu_custom_call.1} parent=1 // pred_region
      _
    $region13: #{tpu_custom_call.1} parent=1 // pred_fallthru
      _
    // Predicated region
    $region14: #{tpu_custom_call.1} parent=1 // pred_check
      _
    $region15: #{tpu_custom_call.1} parent=1 // pred_check_branch
      %36 = sbr.rel (0) target = $region17
    $region16: #{tpu_custom_call.1} parent=1 // pred_region
      %37 = dma.done [#allocation3], 128
    $region17: #{tpu_custom_call.1} parent=1 // pred_fallthru
      _
    // Predicated region
    $region18: #{tpu_custom_call.1} parent=1 // pred_check
      _
    $region19: #{tpu_custom_call.1} parent=1 // pred_check_branch
      %39 = sbr.rel (0) target = $region21
    $region20: #{tpu_custom_call.1} parent=1 // pred_region
      %40 = dma.done [#allocation6], 512
    $region21: #{tpu_custom_call.1} parent=1 // pred_fallthru
      _
    %v42 = vld [vmem:[#allocation2] sm:$0xff]
    %v43 = vld [vmem:[#allocation5] sm:$0xff]
    %v44 = vld [vmem:[#allocation5 + $0x8] sm:$0xff]
    %v45 = vld [vmem:[#allocation5 + $0x10] sm:$0xff]
    %v46 = vld [vmem:[#allocation5 + $0x18] sm:$0xff]
    %v47 = vunpack.c.l.s8.bf16 %v42
    %v48 = vunpack.c.h.s8.bf16 %v42
    %v49 = vunpack.c.l.s8.bf16 %v43
    %v50 = vunpack.c.h.s8.bf16 %v43
    %v51 = vunpack.c.l.s8.bf16 %v44
    %v52 = vunpack.c.h.s8.bf16 %v44
    %v53 = vunpack.c.l.s8.bf16 %v45
    %v54 = vunpack.c.h.s8.bf16 %v45
    %v55 = vunpack.c.l.s8.bf16 %v46
    %v56 = vunpack.c.h.s8.bf16 %v46
    %v57 = vcvt.s32.f32 0
    %58 = vmatprep.subr.bf16.mxu0 0
    %59 = vmatpush1.bf16.msra.mxu0 %v49
    %60 = vmatprep.subr.bf16.mxu0 0
    %61 = vmatpush1.bf16.msra.mxu0 %v50
    %62 = vmatprep.subr.bf16.mxu0 0
    %63 = vmatpush1.bf16.msra.mxu0 %v51
    %64 = vmatprep.subr.bf16.mxu0 0
    %65 = vmatpush1.bf16.msra.mxu0 %v52
    %66 = vmatprep.subr.bf16.mxu0 0
    %67 = vmatpush1.bf16.msra.mxu0 %v53
    %68 = vmatprep.subr.bf16.mxu0 0
    %69 = vmatpush1.bf16.msra.mxu0 %v54
    %70 = vmatprep.subr.bf16.mxu0 0
    %71 = vmatpush1.bf16.msra.mxu0 %v55
    %72 = vmatprep.subr.bf16.mxu0 0
    %73 = vmatpush1.bf16.msra.mxu0 %v56
    %74 = vmatprep.subr.bf16.mxu0 0
    %75 = vmatpush1.bf16.msra.mxu0 0
    %76 = vmatprep.subr.bf16.mxu0 0
    %77 = vmatpush1.bf16.msra.mxu0 0
    %78 = vmatprep.subr.bf16.mxu0 0
    %79 = vmatpush1.bf16.msra.mxu0 0
    %80 = vmatprep.subr.bf16.mxu0 0
    %81 = vmatpush1.bf16.msra.mxu0 0
    %82 = vmatprep.subr.bf16.mxu0 0
    %83 = vmatpush1.bf16.msra.mxu0 0
    %84 = vmatprep.subr.bf16.mxu0 0
    %85 = vmatpush1.bf16.msra.mxu0 0
    %86 = vmatprep.subr.bf16.mxu0 0
    %87 = vmatpush1.bf16.msra.mxu0 0
    %88 = vmatprep.subr.bf16.mxu0 0
    %89 = vmatpush1.bf16.msra.mxu0 0
    %90 = vmatprep.mubr.bf16.mxu0 0
    %91 = vmatmul.mubr.bf16.gmra.mrb[0].mxu0 %v47
    %v92 = vpop.f32.mrb[0].mxu0
    %v93 = vadd.f32 %v57, %v92
    %v94 = vpop.f32.mrb[0].mxu0
    %v95 = vpop.f32.mrb[0].mxu0
    %v96 = vadd.f32 %v57, %v95
    %v97 = vpop.f32.mrb[0].mxu0
    %98 = vmatprep.mubr.bf16.mxu0 0
    %99 = vmatmul.mubr.bf16.gmra.mrb[0].mxu0 %v48
    %v100 = vpop.f32.mrb[0].mxu0
    %v101 = vadd.f32 %v57, %v100
    %v102 = vpop.f32.mrb[0].mxu0
    %v103 = vpop.f32.mrb[0].mxu0
    %v104 = vadd.f32 %v57, %v103
    %v105 = vpop.f32.mrb[0].mxu0
    %106 = vdwg.mxu0
    %v107 = vcvt.f32.s32.to.zero.pseudo %v93
    %v108 = vcvt.f32.s32.to.zero.pseudo %v96
    %v109 = vcvt.f32.s32.to.zero.pseudo %v101
    %v110 = vcvt.f32.s32.to.zero.pseudo %v104
    %v111 = vcvt.s32.f32 %v107
    %v112 = vcvt.s32.f32 %v108
    %v113 = vcvt.s32.f32 %v109
    %v114 = vcvt.s32.f32 %v110
    %v115 = vmul.f32 %v111, 0.02
    %v116 = vmul.f32 %v112, 0.02
    %v117 = vmul.f32 %v113, 0.02
    %v118 = vmul.f32 %v114, 0.02
    %v119 = vld [vmem:[%s2] sm:$0x1]
    %v121 = vlaneseq
    %v122 = vshrl.u32 %v121, 7
    %v123 = vsub.s32 0, %v122
    %v124 = vrot.slane %v119, %v123
    %v126 = vadd.f32 %v115, %v124
    %v127 = vadd.f32 %v116, %v124
    %v128 = vadd.f32 %v117, %v124
    %v129 = vadd.f32 %v118, %v124
    %v130 = vmul.f32 %v126, 0.5
    %v131 = vmul.f32 %v127, 0.5
    %v132 = vmul.f32 %v128, 0.5
    %v133 = vmul.f32 %v129, 0.5
    %v134 = vmul.f32 %v126, 0.70710677
    %v135 = vmul.f32 %v127, 0.70710677
    %v136 = vmul.f32 %v128, 0.70710677
    %v137 = vmul.f32 %v129, 0.70710677
    %v138 = verf.f32.pop %v134
    %v139 = verf.f32.pop %v135
    %v140 = verf.f32.pop %v136
    %v141 = verf.f32.pop %v137
    %v142 = vadd.f32 %v138, 1.0
    %v143 = vadd.f32 %v139, 1.0
    %v144 = vadd.f32 %v140, 1.0
    %v145 = vadd.f32 %v141, 1.0
    %v146 = vmul.f32 %v130, %v142
    %v147 = vmul.f32 %v131, %v143
    %v148 = vmul.f32 %v132, %v144
    %v149 = vmul.f32 %v133, %v145
    %v150 = vround.ne.pseudo %v146
    %v151 = vround.ne.pseudo %v147
    %v152 = vround.ne.pseudo %v148
    %v153 = vround.ne.pseudo %v149
    %v154 = vmax.f32 %v150, -128.0
    %v155 = vmax.f32 %v151, -128.0
    %v156 = vmax.f32 %v152, -128.0
    %v157 = vmax.f32 %v153, -128.0
    %v158 = vmin.f32 %v154, 127.0
    %v159 = vmin.f32 %v155, 127.0
    %v160 = vmin.f32 %v156, 127.0
    %v161 = vmin.f32 %v157, 127.0
    %v162 = vtrunc.f32 %v158
    %v163 = vtrunc.f32 %v159
    %v164 = vtrunc.f32 %v160
    %v165 = vtrunc.f32 %v161
    %v166 = vpack.c.f32.eXmY %v162, %v163, 312
    %v170 = vpack.c.f32.eXmY %v164, %v165, 312
    %v174 = vpack.c.b8 %v170, %v166
    %176 = vst [vmem:[#allocation7] sm:$0xff] %v174
    // Predicated region
    $region22: #{tpu_custom_call.1} parent=1 // pred_check
      _
    $region23: #{tpu_custom_call.1} parent=1 // pred_check_branch
      %178 = sbr.rel (0) target = $region25
    $region24: #{tpu_custom_call.1} parent=1 // pred_region
      %s180 = ssub.s32 128, 128
      %181 = vsyncadd [#allocation4], %s180
      %s183 = sshll.u32 [#allocation7], 4
      %s184 = int_to_ptr.vmem [resolvable:$true] %s183
      %186 = dma.vmem_to_hbm [thread:$0]  %s184, 128, %s3, [#allocation4]
    $region25: #{tpu_custom_call.1} parent=1 // pred_fallthru
      _
    // Predicated region
    $region26: #{tpu_custom_call.1} parent=1 // pred_check
      _
    $region27: #{tpu_custom_call.1} parent=1 // pred_check_branch
      %188 = sbr.rel (0) target = $region29
    $region28: #{tpu_custom_call.1} parent=1 // pred_region
      %189 = dma.done [#allocation4], 128
    $region29: #{tpu_custom_call.1} parent=1 // pred_fallthru
      _
    %190 = vsyncpa [#allocation3], 1
    %191 = vsyncpa [#allocation6], 1
    %192 = vsyncpa [#allocation4], 1

</llo_original>
